<compile_context>
chip_gen: v5e
topology: v5e:2x2
jax: 0.10.0
libtpu: 0.0.40
codegen_flags: <defaults>
</compile_context>

<pallas_src>
import math
import functools

import jax
import jax.numpy as jnp
from jax import lax
from jax.experimental import pallas as pl
from jax.experimental.pallas import tpu as pltpu

# x(N, K) . w(M, K) -> (N, M): contract the shared last axis directly on the MXU
# (PyTorch nn.Linear weight convention, no transpose materialized).
_DN_CONTRACT_LAST = (((1,), (1,)), ((), ()))

_MASK_VALUE = -1e30          # finite "-inf" for masked (padded) prototype columns
_VMEM_LIMIT = 64 * 1024 * 1024


def _round_up(x, m):
    return ((x + m - 1) // m) * m


def _pick_s_tile(sp, d_llm, itemsize, budget_bytes=4 << 20):
    """Largest of {512, 256, 128} that divides sp and fits the per-buffer budget."""
    for ts in (512, 256, 128):
        if ts <= sp and sp % ts == 0 and ts * d_llm * itemsize <= budget_bytes:
            return ts
    return min(sp, 128)


# ---------------------------------------------------------------------------
# Kernel 1: fused K/V projection, emitted head-major.
#   K[h] = wk_h @ src^T + bk_h   -> (E, Sp)   (lane axis = prototype rows, dense)
#   V[h] = val @ wv_h^T + bv_h   -> (Sp, E)
# ---------------------------------------------------------------------------
def _kv_proj_kernel(src_ref, val_ref, wk_ref, bk_ref, wv_ref, bv_ref,
                    k_ref, v_ref, *, n_heads, compute_dtype):
    src = src_ref[...].astype(compute_dtype)           # (ts, d_llm)
    val = val_ref[...].astype(compute_dtype)           # (ts, d_llm)
    for h in range(n_heads):                            # static unroll
        k_h = lax.dot_general(wk_ref[h], src, _DN_CONTRACT_LAST,
                              preferred_element_type=jnp.float32)
        k_h = k_h + bk_ref[h]                            # (E, ts) + (E, 1)
        v_h = lax.dot_general(val, wv_ref[h], _DN_CONTRACT_LAST,
                              preferred_element_type=jnp.float32)
        v_h = v_h + bv_ref[h]                            # (ts, E) + (1, E)
        k_ref[h] = k_h.astype(k_ref.dtype)
        v_ref[h] = v_h.astype(v_ref.dtype)


def kv_projection(source, value, wk_hm, bk_hm, wv_hm, bv_hm, *, compute_dtype):
    sp, d_llm = source.shape
    n_heads, e, _ = wk_hm.shape
    dk = n_heads * e
    in_itemsize = max(jnp.dtype(source.dtype).itemsize,
                      jnp.dtype(compute_dtype).itemsize)
    ts = _pick_s_tile(sp, d_llm, in_itemsize)
    grid = (sp // ts,)

    cd_bytes = jnp.dtype(compute_dtype).itemsize
    cost = pl.CostEstimate(
        flops=4 * sp * d_llm * dk,
        transcendentals=0,
        bytes_accessed=2 * sp * d_llm * jnp.dtype(source.dtype).itemsize
        + 2 * dk * d_llm * cd_bytes + 2 * dk * 4
        + 2 * sp * dk * cd_bytes,
    )

    kern = functools.partial(_kv_proj_kernel, n_heads=n_heads,
                             compute_dtype=compute_dtype)
    return pl.pallas_call(
        kern,
        grid=grid,
        in_specs=[
            pl.BlockSpec((ts, d_llm), lambda s: (s, 0)),
            pl.BlockSpec((ts, d_llm), lambda s: (s, 0)),
            pl.BlockSpec((n_heads, e, d_llm), lambda s: (0, 0, 0)),
            pl.BlockSpec((n_heads, e, 1), lambda s: (0, 0, 0)),
            pl.BlockSpec((n_heads, e, d_llm), lambda s: (0, 0, 0)),
            pl.BlockSpec((n_heads, 1, e), lambda s: (0, 0, 0)),
        ],
        out_specs=(
            pl.BlockSpec((n_heads, e, ts), lambda s: (0, 0, s)),   # K head-major
            pl.BlockSpec((n_heads, ts, e), lambda s: (0, s, 0)),   # V head-major
        ),
        out_shape=(
            jax.ShapeDtypeStruct((n_heads, e, sp), compute_dtype),
            jax.ShapeDtypeStruct((n_heads, sp, e), compute_dtype),
        ),
        compiler_params=pltpu.CompilerParams(
            dimension_semantics=("parallel",),
            vmem_limit_bytes=_VMEM_LIMIT),
        cost_estimate=cost,
    )(source, value, wk_hm, bk_hm, wv_hm, bv_hm)


# ---------------------------------------------------------------------------
# Kernel 2: fused Q projection + multi-head reprogramming attention + out proj.
# Grid: (row tiles of the flattened B*L axis,).  All weights and head-major K/V
# have constant block indices -> DMA'd once and reused (Mosaic keeps constant-index
# blocks resident; no per-step re-fetch).
# ---------------------------------------------------------------------------
def _fused_attn_kernel(x_ref, wq_ref, bq_ref, k_ref, v_ref, wo_ref, bo_ref,
                       o_ref, *, n_heads, scale, s_valid, compute_dtype):
    x = x_ref[...].astype(compute_dtype)                 # (tr, d_model)
    tr = x.shape[0]
    sp = k_ref.shape[-1]

    need_mask = sp > s_valid
    if need_mask:
        col = lax.broadcasted_iota(jnp.int32, (tr, sp), 1)
        valid = col < s_valid

    y = None
    for h in range(n_heads):                              # static unroll over heads
        # Per-head Q projection: (tr, d_model) . (E, d_model)^T -> (tr, E)
        q_h = lax.dot_general(x, wq_ref[h], _DN_CONTRACT_LAST,
                              preferred_element_type=jnp.float32)
        q_h = q_h + bq_ref[h]                             # (tr, E) + (1, E), f32

        # Scores: (tr, E) @ (E, Sp) -> (tr, Sp), lane-dense Sp axis.
        s = jnp.dot(q_h.astype(compute_dtype), k_ref[h],
                    preferred_element_type=jnp.float32) * scale
        if need_mask:
            s = jnp.where(valid, s, _MASK_VALUE)

        # f32 softmax (max-subtracted); EUP approx reciprocal for the normalization.
        m = jnp.max(s, axis=-1, keepdims=True)
        p = jnp.exp(s - m)
        inv = pl.reciprocal(jnp.sum(p, axis=-1, keepdims=True), approx=True)
        a = (p * inv).astype(compute_dtype)
        # TODO(synk): attention dropout omitted (inference / eval-mode semantics).

        # (tr, Sp) @ (Sp, E) -> (tr, E)
        o_h = jnp.dot(a, v_ref[h], preferred_element_type=jnp.float32)

        # Per-head output-projection accumulation: (tr, E) . (d_llm, E)^T -> (tr, d_llm)
        y_h = lax.dot_general(o_h.astype(compute_dtype), wo_ref[h],
                              _DN_CONTRACT_LAST, preferred_element_type=jnp.float32)
        y = y_h if y is None else y + y_h

    y = y + bo_ref[...]                                   # (tr, d_llm) + (1, d_llm)
    o_ref[...] = y.astype(o_ref.dtype)


# ---------------------------------------------------------------------------
# Full forward pass.
# ---------------------------------------------------------------------------
def reprogramming_layer_forward(params, target_embedding, source_embedding,
                                value_embedding, n_heads,
                                compute_dtype=jnp.bfloat16,
                                out_dtype=jnp.float32,
                                row_tile=256):
    B, L, d_model = target_embedding.shape
    S, d_llm = source_embedding.shape
    dk = params["wq"].shape[0]
    H = n_heads
    E = dk // H
    scale = 1.0 / math.sqrt(E)
    cd = compute_dtype

    # Head-major, pre-cast weights (one-time XLA ops; kernels never cast constants).
    wq_hm = params["wq"].reshape(H, E, d_model).astype(cd)
    bq_hm = params["bq"].reshape(H, 1, E).astype(jnp.float32)
    wk_hm = params["wk"].reshape(H, E, d_llm).astype(cd)
    bk_hm = params["bk"].reshape(H, E, 1).astype(jnp.float32)
    wv_hm = params["wv"].reshape(H, E, d_llm).astype(cd)
    bv_hm = params["bv"].reshape(H, 1, E).astype(jnp.float32)
    wo_hm = params["wo"].reshape(d_llm, H, E).transpose(1, 0, 2).astype(cd)
    bo = params["bo"].reshape(1, d_llm).astype(jnp.float32)

    # Pad prototypes to a lane-dense multiple of 128; padded keys masked in-kernel.
    Sp = _round_up(S, 128)
    if Sp != S:
        pad = ((0, Sp - S), (0, 0))
        source_embedding = jnp.pad(source_embedding, pad)
        value_embedding = jnp.pad(value_embedding, pad)

    # Head-major K (H, E, Sp) / V (H, Sp, E) in compute_dtype.
    k_hm, v_hm = kv_projection(source_embedding, value_embedding,
                               wk_hm, bk_hm, wv_hm, bv_hm, compute_dtype=cd)

    # Flatten (B, L) -> rows; attention is fully row-independent (K/V shared per batch).
    R = B * L
    x = target_embedding.reshape(R, d_model)
    tr = min(row_tile, _round_up(R, 8))
    Rp = _round_up(R, tr)
    if Rp != R:
        x = jnp.pad(x, ((0, Rp - R), (0, 0)))
    grid = (Rp // tr,)

    cd_bytes = jnp.dtype(cd).itemsize
    cost = pl.CostEstimate(
        flops=2 * Rp * d_model * dk            # Q projection
        + 4 * Rp * Sp * dk                     # QK^T + AV over all heads
        + 2 * Rp * dk * d_llm,                 # output projection
        transcendentals=H * Rp * Sp,           # exp in softmax
        bytes_accessed=Rp * d_model * jnp.dtype(x.dtype).itemsize
        + (dk * d_model + 2 * Sp * dk + d_llm * dk) * cd_bytes
        + (dk + d_llm) * 4
        + Rp * d_llm * jnp.dtype(out_dtype).itemsize,
    )

    kern = functools.partial(_fused_attn_kernel, n_heads=H, scale=scale,
                             s_valid=S, compute_dtype=cd)
    out = pl.pallas_call(
        kern,
        grid=grid,
        in_specs=[
            pl.BlockSpec((tr, d_model), lambda r: (r, 0)),
            pl.BlockSpec((H, E, d_model), lambda r: (0, 0, 0)),
            pl.BlockSpec((H, 1, E), lambda r: (0, 0, 0)),
            pl.BlockSpec((H, E, Sp), lambda r: (0, 0, 0)),   # constant -> K resident
            pl.BlockSpec((H, Sp, E), lambda r: (0, 0, 0)),   # constant -> V resident
            pl.BlockSpec((H, d_llm, E), lambda r: (0, 0, 0)),
            pl.BlockSpec((1, d_llm), lambda r: (0, 0)),
        ],
        out_specs=pl.BlockSpec((tr, d_llm), lambda r: (r, 0)),
        out_shape=jax.ShapeDtypeStruct((Rp, d_llm), out_dtype),
        compiler_params=pltpu.CompilerParams(
            dimension_semantics=("parallel",),
            vmem_limit_bytes=_VMEM_LIMIT),
        cost_estimate=cost,
    )(x, wq_hm, bq_hm, k_hm, v_hm, wo_hm, bo)

    if Rp != R:
        out = out[:R]
    return out.reshape(B, L, d_llm)


# Pure-JAX reference (numerical sanity check).
def reprogramming_layer_reference(params, target, source, value, n_heads):
    B, L, _ = target.shape
    S, _ = source.shape
    H = n_heads
    q = target @ params["wq"].T + params["bq"]
    k = source @ params["wk"].T + params["bk"]
    v = value @ params["wv"].T + params["bv"]
    E = q.shape[-1] // H
    q = q.reshape(B, L, H, E)
    k = k.reshape(S, H, E)
    v = v.reshape(S, H, E)
    scores = jnp.einsum("blhe,she->bhls", q, k) / math.sqrt(E)
    a = jax.nn.softmax(scores, axis=-1)
    out = jnp.einsum("bhls,she->blhe", a, v).reshape(B, L, H * E)
    return out @ params["wo"].T + params["bo"]


def init_params(key, d_model, n_heads, d_llm, d_keys=None):
    d_keys = d_keys or d_model // n_heads
    dk = d_keys * n_heads
    ks = jax.random.split(key, 8)

    def lin(kw, kb, dout, din):
        bound = 1.0 / math.sqrt(din)
        w = jax.random.uniform(kw, (dout, din), jnp.float32, -bound, bound)
        b = jax.random.uniform(kb, (dout,), jnp.float32, -bound, bound)
        return w, b

    wq, bq = lin(ks[0], ks[1], dk, d_model)
    wk, bk = lin(ks[2], ks[3], dk, d_llm)
    wv, bv = lin(ks[4], ks[5], dk, d_llm)
    wo, bo = lin(ks[6], ks[7], d_llm, dk)
    return dict(wq=wq, bq=bq, wk=wk, bk=bk, wv=wv, bv=bv, wo=wo, bo=bo)


if __name__ == "__main__":
    B, L, d_model = 2, 8, 32
    n_heads = 4
    d_llm = 64
    S = 16

    key = jax.random.PRNGKey(0)
    kp, kt, ks_, kv_ = jax.random.split(key, 4)

    params = init_params(kp, d_model, n_heads, d_llm)
    target = jax.random.normal(kt, (B, L, d_model), jnp.float32)
    source = jax.random.normal(ks_, (S, d_llm), jnp.float32)
    value = jax.random.normal(kv_, (S, d_llm), jnp.float32)

    ref = reprogramming_layer_reference(params, target, source, value, n_heads)

    # f32 operand path (tolerance slightly relaxed for the EUP approx reciprocal).
    out = reprogramming_layer_forward(params, target, source, value, n_heads,
                                      compute_dtype=jnp.float32)
    out = jax.block_until_ready(out)
    assert out.shape == (B, L, d_llm)
    assert jnp.allclose(out, ref, atol=5e-3, rtol=5e-3), "f32 kernel mismatch vs reference"

    # bf16 MXU-operand path (f32 accumulation + f32 softmax) — looser tolerance.
    out_bf16 = reprogramming_layer_forward(params, target, source, value, n_heads,
                                           compute_dtype=jnp.bfloat16)
    out_bf16 = jax.block_until_ready(out_bf16)
    assert out_bf16.shape == (B, L, d_llm)
    assert jnp.allclose(out_bf16, ref, atol=1e-1, rtol=1e-1), "bf16 kernel mismatch vs reference"

    print("KERNEL_OK")
</pallas_src>

<mosaic_0001>
module attributes {stable_mosaic.version = 11 : i64} {
  func.func @_kv_proj_kernel(%arg0: i32, %arg1: memref<128x64xf32, #tpu.memory_space<vmem>>, %arg2: memref<128x64xf32, #tpu.memory_space<vmem>>, %arg3: memref<4x8x64xf32, #tpu.memory_space<vmem>>, %arg4: memref<4x8x1xf32, #tpu.memory_space<vmem>>, %arg5: memref<4x8x64xf32, #tpu.memory_space<vmem>>, %arg6: memref<4x1x8xf32, #tpu.memory_space<vmem>>, %arg7: memref<4x8x128xf32, #tpu.memory_space<vmem>>, %arg8: memref<4x128x8xf32, #tpu.memory_space<vmem>>) attributes {dimension_semantics = [#tpu.dimension_semantics<parallel>], iteration_bounds = array<i64: 1>, scalar_prefetch = 0 : i64, scratch_operands = 0 : i64, tpu.core_type = #tpu.core_type<tc>, window_params = [{transform_indices = @transform_0, window_bounds = array<i64: 128, 64>}, {transform_indices = @transform_1, window_bounds = array<i64: 128, 64>}, {pipeline_mode = #tpu.pipeline_mode<synchronous>, transform_indices = @transform_2, window_bounds = array<i64: 4, 8, 64>}, {pipeline_mode = #tpu.pipeline_mode<synchronous>, transform_indices = @transform_3, window_bounds = array<i64: 4, 8, 1>}, {pipeline_mode = #tpu.pipeline_mode<synchronous>, transform_indices = @transform_4, window_bounds = array<i64: 4, 8, 64>}, {pipeline_mode = #tpu.pipeline_mode<synchronous>, transform_indices = @transform_5, window_bounds = array<i64: 4, 1, 8>}, {transform_indices = @transform_6, window_bounds = array<i64: 4, 8, 128>}, {transform_indices = @transform_7, window_bounds = array<i64: 4, 128, 8>}]} {
    %c0 = arith.constant 0 : index
    %c0_0 = arith.constant 0 : index
    %0 = vector.load %arg1[%c0, %c0_0] : memref<128x64xf32, #tpu.memory_space<vmem>>, vector<128x64xf32>
    %c0_1 = arith.constant 0 : index
    %c0_2 = arith.constant 0 : index
    %1 = vector.load %arg2[%c0_1, %c0_2] : memref<128x64xf32, #tpu.memory_space<vmem>>, vector<128x64xf32>
    %c0_3 = arith.constant 0 : index
    %c0_4 = arith.constant 0 : index
    %c0_5 = arith.constant 0 : index
    %2 = vector.load %arg3[%c0_3, %c0_4, %c0_5] : memref<4x8x64xf32, #tpu.memory_space<vmem>>, vector<1x8x64xf32>
    %3 = vector.shape_cast %2 : vector<1x8x64xf32> to vector<8x64xf32>
    %cst = arith.constant dense<0.000000e+00> : vector<8x128xf32>
    %4 = tpu.matmul %3, %0, %cst {dimension_numbers = #tpu.dot_dimension_numbers<[1], [1], [0], [0], [0, 0, 1, 0], [], []>} : vector<8x64xf32>, vector<128x64xf32>, vector<8x128xf32> -> vector<8x128xf32>
    %c0_6 = arith.constant 0 : index
    %c0_7 = arith.constant 0 : index
    %c0_8 = arith.constant 0 : index
    %5 = vector.load %arg4[%c0_6, %c0_7, %c0_8] : memref<4x8x1xf32, #tpu.memory_space<vmem>>, vector<1x8x1xf32>
    %6 = vector.shape_cast %5 : vector<1x8x1xf32> to vector<8x1xf32>
    %7 = vector.broadcast %6 : vector<8x1xf32> to vector<8x128xf32>
    %8 = arith.addf %4, %7 : vector<8x128xf32>
    %c0_9 = arith.constant 0 : index
    %c0_10 = arith.constant 0 : index
    %c0_11 = arith.constant 0 : index
    %9 = vector.load %arg5[%c0_9, %c0_10, %c0_11] : memref<4x8x64xf32, #tpu.memory_space<vmem>>, vector<1x8x64xf32>
    %10 = vector.shape_cast %9 : vector<1x8x64xf32> to vector<8x64xf32>
    %cst_12 = arith.constant dense<0.000000e+00> : vector<128x8xf32>
    %11 = tpu.matmul %1, %10, %cst_12 {dimension_numbers = #tpu.dot_dimension_numbers<[1], [1], [0], [0], [0, 0, 1, 0], [], []>} : vector<128x64xf32>, vector<8x64xf32>, vector<128x8xf32> -> vector<128x8xf32>
    %c0_13 = arith.constant 0 : index
    %c0_14 = arith.constant 0 : index
    %c0_15 = arith.constant 0 : index
    %12 = vector.load %arg6[%c0_13, %c0_14, %c0_15] : memref<4x1x8xf32, #tpu.memory_space<vmem>>, vector<1x1x8xf32>
    %13 = vector.shape_cast %12 : vector<1x1x8xf32> to vector<1x8xf32>
    %14 = vector.broadcast %13 : vector<1x8xf32> to vector<128x8xf32>
    %15 = arith.addf %11, %14 : vector<128x8xf32>
    %c0_16 = arith.constant 0 : index
    %c0_17 = arith.constant 0 : index
    %c0_18 = arith.constant 0 : index
    %16 = vector.load %arg7[%c0_16, %c0_17, %c0_18] : memref<4x8x128xf32, #tpu.memory_space<vmem>>, vector<1x8x128xf32>
    %17 = vector.shape_cast %16 : vector<1x8x128xf32> to vector<8x128xf32>
    %18 = vector.shape_cast %8 : vector<8x128xf32> to vector<1x8x128xf32>
    tpu.vector_store %arg7[%c0_16, %c0_17, %c0_18], %18 {strides = array<i32>} : memref<4x8x128xf32, #tpu.memory_space<vmem>>, vector<1x8x128xf32>,
    %c0_19 = arith.constant 0 : index
    %c0_20 = arith.constant 0 : index
    %c0_21 = arith.constant 0 : index
    %19 = vector.load %arg8[%c0_19, %c0_20, %c0_21] : memref<4x128x8xf32, #tpu.memory_space<vmem>>, vector<1x128x8xf32>
    %20 = vector.shape_cast %19 : vector<1x128x8xf32> to vector<128x8xf32>
    %21 = vector.shape_cast %15 : vector<128x8xf32> to vector<1x128x8xf32>
    tpu.vector_store %arg8[%c0_19, %c0_20, %c0_21], %21 {strides = array<i32>} : memref<4x128x8xf32, #tpu.memory_space<vmem>>, vector<1x128x8xf32>,
    %c1 = arith.constant 1 : index
    %c0_22 = arith.constant 0 : index
    %c0_23 = arith.constant 0 : index
    %22 = vector.load %arg3[%c1, %c0_22, %c0_23] : memref<4x8x64xf32, #tpu.memory_space<vmem>>, vector<1x8x64xf32>
    %23 = vector.shape_cast %22 : vector<1x8x64xf32> to vector<8x64xf32>
    %cst_24 = arith.constant dense<0.000000e+00> : vector<8x128xf32>
    %24 = tpu.matmul %23, %0, %cst_24 {dimension_numbers = #tpu.dot_dimension_numbers<[1], [1], [0], [0], [0, 0, 1, 0], [], []>} : vector<8x64xf32>, vector<128x64xf32>, vector<8x128xf32> -> vector<8x128xf32>
    %c1_25 = arith.constant 1 : index
    %c0_26 = arith.constant 0 : index
    %c0_27 = arith.constant 0 : index
    %25 = vector.load %arg4[%c1_25, %c0_26, %c0_27] : memref<4x8x1xf32, #tpu.memory_space<vmem>>, vector<1x8x1xf32>
    %26 = vector.shape_cast %25 : vector<1x8x1xf32> to vector<8x1xf32>
    %27 = vector.broadcast %26 : vector<8x1xf32> to vector<8x128xf32>
    %28 = arith.addf %24, %27 : vector<8x128xf32>
    %c1_28 = arith.constant 1 : index
    %c0_29 = arith.constant 0 : index
    %c0_30 = arith.constant 0 : index
    %29 = vector.load %arg5[%c1_28, %c0_29, %c0_30] : memref<4x8x64xf32, #tpu.memory_space<vmem>>, vector<1x8x64xf32>
    %30 = vector.shape_cast %29 : vector<1x8x64xf32> to vector<8x64xf32>
    %cst_31 = arith.constant dense<0.000000e+00> : vector<128x8xf32>
    %31 = tpu.matmul %1, %30, %cst_31 {dimension_numbers = #tpu.dot_dimension_numbers<[1], [1], [0], [0], [0, 0, 1, 0], [], []>} : vector<128x64xf32>, vector<8x64xf32>, vector<128x8xf32> -> vector<128x8xf32>
    %c1_32 = arith.constant 1 : index
    %c0_33 = arith.constant 0 : index
    %c0_34 = arith.constant 0 : index
    %32 = vector.load %arg6[%c1_32, %c0_33, %c0_34] : memref<4x1x8xf32, #tpu.memory_space<vmem>>, vector<1x1x8xf32>
    %33 = vector.shape_cast %32 : vector<1x1x8xf32> to vector<1x8xf32>
    %34 = vector.broadcast %33 : vector<1x8xf32> to vector<128x8xf32>
    %35 = arith.addf %31, %34 : vector<128x8xf32>
    %c1_35 = arith.constant 1 : index
    %c0_36 = arith.constant 0 : index
    %c0_37 = arith.constant 0 : index
    %36 = vector.load %arg7[%c1_35, %c0_36, %c0_37] : memref<4x8x128xf32, #tpu.memory_space<vmem>>, vector<1x8x128xf32>
    %37 = vector.shape_cast %36 : vector<1x8x128xf32> to vector<8x128xf32>
    %38 = vector.shape_cast %28 : vector<8x128xf32> to vector<1x8x128xf32>
    tpu.vector_store %arg7[%c1_35, %c0_36, %c0_37], %38 {strides = array<i32>} : memref<4x8x128xf32, #tpu.memory_space<vmem>>, vector<1x8x128xf32>,
    %c1_38 = arith.constant 1 : index
    %c0_39 = arith.constant 0 : index
    %c0_40 = arith.constant 0 : index
    %39 = vector.load %arg8[%c1_38, %c0_39, %c0_40] : memref<4x128x8xf32, #tpu.memory_space<vmem>>, vector<1x128x8xf32>
    %40 = vector.shape_cast %39 : vector<1x128x8xf32> to vector<128x8xf32>
    %41 = vector.shape_cast %35 : vector<128x8xf32> to vector<1x128x8xf32>
    tpu.vector_store %arg8[%c1_38, %c0_39, %c0_40], %41 {strides = array<i32>} : memref<4x128x8xf32, #tpu.memory_space<vmem>>, vector<1x128x8xf32>,
    %c2 = arith.constant 2 : index
    %c0_41 = arith.constant 0 : index
    %c0_42 = arith.constant 0 : index
    %42 = vector.load %arg3[%c2, %c0_41, %c0_42] : memref<4x8x64xf32, #tpu.memory_space<vmem>>, vector<1x8x64xf32>
    %43 = vector.shape_cast %42 : vector<1x8x64xf32> to vector<8x64xf32>
    %cst_43 = arith.constant dense<0.000000e+00> : vector<8x128xf32>
    %44 = tpu.matmul %43, %0, %cst_43 {dimension_numbers = #tpu.dot_dimension_numbers<[1], [1], [0], [0], [0, 0, 1, 0], [], []>} : vector<8x64xf32>, vector<128x64xf32>, vector<8x128xf32> -> vector<8x128xf32>
    %c2_44 = arith.constant 2 : index
    %c0_45 = arith.constant 0 : index
    %c0_46 = arith.constant 0 : index
    %45 = vector.load %arg4[%c2_44, %c0_45, %c0_46] : memref<4x8x1xf32, #tpu.memory_space<vmem>>, vector<1x8x1xf32>
    %46 = vector.shape_cast %45 : vector<1x8x1xf32> to vector<8x1xf32>
    %47 = vector.broadcast %46 : vector<8x1xf32> to vector<8x128xf32>
    %48 = arith.addf %44, %47 : vector<8x128xf32>
    %c2_47 = arith.constant 2 : index
    %c0_48 = arith.constant 0 : index
    %c0_49 = arith.constant 0 : index
    %49 = vector.load %arg5[%c2_47, %c0_48, %c0_49] : memref<4x8x64xf32, #tpu.memory_space<vmem>>, vector<1x8x64xf32>
    %50 = vector.shape_cast %49 : vector<1x8x64xf32> to vector<8x64xf32>
    %cst_50 = arith.constant dense<0.000000e+00> : vector<128x8xf32>
    %51 = tpu.matmul %1, %50, %cst_50 {dimension_numbers = #tpu.dot_dimension_numbers<[1], [1], [0], [0], [0, 0, 1, 0], [], []>} : vector<128x64xf32>, vector<8x64xf32>, vector<128x8xf32> -> vector<128x8xf32>
    %c2_51 = arith.constant 2 : index
    %c0_52 = arith.constant 0 : index
    %c0_53 = arith.constant 0 : index
    %52 = vector.load %arg6[%c2_51, %c0_52, %c0_53] : memref<4x1x8xf32, #tpu.memory_space<vmem>>, vector<1x1x8xf32>
    %53 = vector.shape_cast %52 : vector<1x1x8xf32> to vector<1x8xf32>
    %54 = vector.broadcast %53 : vector<1x8xf32> to vector<128x8xf32>
    %55 = arith.addf %51, %54 : vector<128x8xf32>
    %c2_54 = arith.constant 2 : index
    %c0_55 = arith.constant 0 : index
    %c0_56 = arith.constant 0 : index
    %56 = vector.load %arg7[%c2_54, %c0_55, %c0_56] : memref<4x8x128xf32, #tpu.memory_space<vmem>>, vector<1x8x128xf32>
    %57 = vector.shape_cast %56 : vector<1x8x128xf32> to vector<8x128xf32>
    %58 = vector.shape_cast %48 : vector<8x128xf32> to vector<1x8x128xf32>
    tpu.vector_store %arg7[%c2_54, %c0_55, %c0_56], %58 {strides = array<i32>} : memref<4x8x128xf32, #tpu.memory_space<vmem>>, vector<1x8x128xf32>,
    %c2_57 = arith.constant 2 : index
    %c0_58 = arith.constant 0 : index
    %c0_59 = arith.constant 0 : index
    %59 = vector.load %arg8[%c2_57, %c0_58, %c0_59] : memref<4x128x8xf32, #tpu.memory_space<vmem>>, vector<1x128x8xf32>
    %60 = vector.shape_cast %59 : vector<1x128x8xf32> to vector<128x8xf32>
    %61 = vector.shape_cast %55 : vector<128x8xf32> to vector<1x128x8xf32>
    tpu.vector_store %arg8[%c2_57, %c0_58, %c0_59], %61 {strides = array<i32>} : memref<4x128x8xf32, #tpu.memory_space<vmem>>, vector<1x128x8xf32>,
    %c3 = arith.constant 3 : index
    %c0_60 = arith.constant 0 : index
    %c0_61 = arith.constant 0 : index
    %62 = vector.load %arg3[%c3, %c0_60, %c0_61] : memref<4x8x64xf32, #tpu.memory_space<vmem>>, vector<1x8x64xf32>
    %63 = vector.shape_cast %62 : vector<1x8x64xf32> to vector<8x64xf32>
    %cst_62 = arith.constant dense<0.000000e+00> : vector<8x128xf32>
    %64 = tpu.matmul %63, %0, %cst_62 {dimension_numbers = #tpu.dot_dimension_numbers<[1], [1], [0], [0], [0, 0, 1, 0], [], []>} : vector<8x64xf32>, vector<128x64xf32>, vector<8x128xf32> -> vector<8x128xf32>
    %c3_63 = arith.constant 3 : index
    %c0_64 = arith.constant 0 : index
    %c0_65 = arith.constant 0 : index
    %65 = vector.load %arg4[%c3_63, %c0_64, %c0_65] : memref<4x8x1xf32, #tpu.memory_space<vmem>>, vector<1x8x1xf32>
    %66 = vector.shape_cast %65 : vector<1x8x1xf32> to vector<8x1xf32>
    %67 = vector.broadcast %66 : vector<8x1xf32> to vector<8x128xf32>
    %68 = arith.addf %64, %67 : vector<8x128xf32>
    %c3_66 = arith.constant 3 : index
    %c0_67 = arith.constant 0 : index
    %c0_68 = arith.constant 0 : index
    %69 = vector.load %arg5[%c3_66, %c0_67, %c0_68] : memref<4x8x64xf32, #tpu.memory_space<vmem>>, vector<1x8x64xf32>
    %70 = vector.shape_cast %69 : vector<1x8x64xf32> to vector<8x64xf32>
    %cst_69 = arith.constant dense<0.000000e+00> : vector<128x8xf32>
    %71 = tpu.matmul %1, %70, %cst_69 {dimension_numbers = #tpu.dot_dimension_numbers<[1], [1], [0], [0], [0, 0, 1, 0], [], []>} : vector<128x64xf32>, vector<8x64xf32>, vector<128x8xf32> -> vector<128x8xf32>
    %c3_70 = arith.constant 3 : index
    %c0_71 = arith.constant 0 : index
    %c0_72 = arith.constant 0 : index
    %72 = vector.load %arg6[%c3_70, %c0_71, %c0_72] : memref<4x1x8xf32, #tpu.memory_space<vmem>>, vector<1x1x8xf32>
    %73 = vector.shape_cast %72 : vector<1x1x8xf32> to vector<1x8xf32>
    %74 = vector.broadcast %73 : vector<1x8xf32> to vector<128x8xf32>
    %75 = arith.addf %71, %74 : vector<128x8xf32>
    %c3_73 = arith.constant 3 : index
    %c0_74 = arith.constant 0 : index
    %c0_75 = arith.constant 0 : index
    %76 = vector.load %arg7[%c3_73, %c0_74, %c0_75] : memref<4x8x128xf32, #tpu.memory_space<vmem>>, vector<1x8x128xf32>
    %77 = vector.shape_cast %76 : vector<1x8x128xf32> to vector<8x128xf32>
    %78 = vector.shape_cast %68 : vector<8x128xf32> to vector<1x8x128xf32>
    tpu.vector_store %arg7[%c3_73, %c0_74, %c0_75], %78 {strides = array<i32>} : memref<4x8x128xf32, #tpu.memory_space<vmem>>, vector<1x8x128xf32>,
    %c3_76 = arith.constant 3 : index
    %c0_77 = arith.constant 0 : index
    %c0_78 = arith.constant 0 : index
    %79 = vector.load %arg8[%c3_76, %c0_77, %c0_78] : memref<4x128x8xf32, #tpu.memory_space<vmem>>, vector<1x128x8xf32>
    %80 = vector.shape_cast %79 : vector<1x128x8xf32> to vector<128x8xf32>
    %81 = vector.shape_cast %75 : vector<128x8xf32> to vector<1x128x8xf32>
    tpu.vector_store %arg8[%c3_76, %c0_77, %c0_78], %81 {strides = array<i32>} : memref<4x128x8xf32, #tpu.memory_space<vmem>>, vector<1x128x8xf32>,
    return
  }
  func.func @transform_0(%arg0: i32) -> (i32, i32) {
    %c0_i32 = arith.constant 0 : i32
    %c0_i32_0 = arith.constant 0 : i32
    return %arg0, %c0_i32 : i32, i32
  }
  func.func @transform_1(%arg0: i32) -> (i32, i32) {
    %c0_i32 = arith.constant 0 : i32
    %c0_i32_0 = arith.constant 0 : i32
    return %arg0, %c0_i32 : i32, i32
  }
  func.func @transform_2(%arg0: i32) -> (i32, i32, i32) {
    %c0_i32 = arith.constant 0 : i32
    %c0_i32_0 = arith.constant 0 : i32
    %c0_i32_1 = arith.constant 0 : i32
    %c0_i32_2 = arith.constant 0 : i32
    return %c0_i32, %c0_i32_0, %c0_i32_1 : i32, i32, i32
  }
  func.func @transform_3(%arg0: i32) -> (i32, i32, i32) {
    %c0_i32 = arith.constant 0 : i32
    %c0_i32_0 = arith.constant 0 : i32
    %c0_i32_1 = arith.constant 0 : i32
    %c0_i32_2 = arith.constant 0 : i32
    return %c0_i32, %c0_i32_0, %c0_i32_1 : i32, i32, i32
  }
  func.func @transform_4(%arg0: i32) -> (i32, i32, i32) {
    %c0_i32 = arith.constant 0 : i32
    %c0_i32_0 = arith.constant 0 : i32
    %c0_i32_1 = arith.constant 0 : i32
    %c0_i32_2 = arith.constant 0 : i32
    return %c0_i32, %c0_i32_0, %c0_i32_1 : i32, i32, i32
  }
  func.func @transform_5(%arg0: i32) -> (i32, i32, i32) {
    %c0_i32 = arith.constant 0 : i32
    %c0_i32_0 = arith.constant 0 : i32
    %c0_i32_1 = arith.constant 0 : i32
    %c0_i32_2 = arith.constant 0 : i32
    return %c0_i32, %c0_i32_0, %c0_i32_1 : i32, i32, i32
  }
  func.func @transform_6(%arg0: i32) -> (i32, i32, i32) {
    %c0_i32 = arith.constant 0 : i32
    %c0_i32_0 = arith.constant 0 : i32
    %c0_i32_1 = arith.constant 0 : i32
    return %c0_i32, %c0_i32_0, %arg0 : i32, i32, i32
  }
  func.func @transform_7(%arg0: i32) -> (i32, i32, i32) {
    %c0_i32 = arith.constant 0 : i32
    %c0_i32_0 = arith.constant 0 : i32
    %c0_i32_1 = arith.constant 0 : i32
    return %c0_i32, %arg0, %c0_i32_0 : i32, i32, i32
  }
}

</mosaic_0001>

<llo_original>
// kernel: tpu_custom_call.1
$region0: #{tpu_custom_call.1}
  #allocation0 [shape = 'u32[]', space=smem, size = 0x4, offset = 0x4, fixed_abs, tag = 'smem constant byte address 0x4 - core index']
  #allocation1 [shape = 'u32[72,128]{1,0:T(1,128)}', space=vmem, size = 0x9000, scoped, tag = 'internal scratch']
  %s0 = inlined_call_operand.vmem [shape: f32[128,64], index: 0, kind: input, shape index: {}]
  %s1 = inlined_call_operand.vmem [shape: f32[128,64], index: 1, kind: input, shape index: {}]
  %s2 = inlined_call_operand.vmem [shape: f32[4,8,64], index: 2, kind: input, shape index: {}]
  %s3 = inlined_call_operand.vmem [shape: f32[4,8,1], index: 3, kind: input, shape index: {}]
  %s4 = inlined_call_operand.vmem [shape: f32[4,8,64], index: 4, kind: input, shape index: {}]
  %s5 = inlined_call_operand.vmem [shape: f32[4,1,8], index: 5, kind: input, shape index: {}]
  %s6 = inlined_call_operand.hbm [shape: f32[4,8,128], index: 6, kind: output, shape index: {0}]
  %s7 = inlined_call_operand.vmem [shape: f32[4,128,8], index: 7, kind: output, shape index: {1}]
  %8 = xla_tuple %s6, %s7
  %s9 = sld [smem:[#allocation0]]
  $region42: #{tpu_custom_call.1} parent=0
    _
  %s11 = ssub.s32 1, %s9
  %s12 = scalar_select 0, %s11, %s9
  $region1: #{tpu_custom_call.1} parent=0
    #allocation2 [shape = 'u8[16384]{0}', space=vmem, size = 0x4000, scoped, tag = 'output window, operand 0, single buffered']
    #allocation3 [shape = 's32[1]{0}', space=sflag, size = 0x4, scoped, tag = 'scoped memory for tpu_custom_call.1']
    %13 = vsyncpa [#allocation3], 0
    // Predicated region
    $region2: #{tpu_custom_call.1} parent=1 // pred_check
      _
    $region3: #{tpu_custom_call.1} parent=1 // pred_check_branch
      %15 = sbr.rel (0) target = $region5
    $region4: #{tpu_custom_call.1} parent=1 // pred_region
      _
    $region5: #{tpu_custom_call.1} parent=1 // pred_fallthru
      _
    // Predicated region
    $region6: #{tpu_custom_call.1} parent=1 // pred_check
      _
    $region7: #{tpu_custom_call.1} parent=1 // pred_check_branch
      %17 = sbr.rel (0) target = $region9
    $region8: #{tpu_custom_call.1} parent=1 // pred_region
      _
    $region9: #{tpu_custom_call.1} parent=1 // pred_fallthru
      _
    // Predicated region
    $region10: #{tpu_custom_call.1} parent=1 // pred_check
      _
    $region11: #{tpu_custom_call.1} parent=1 // pred_check_branch
      %19 = sbr.rel (0) target = $region13
    $region12: #{tpu_custom_call.1} parent=1 // pred_region
      _
    $region13: #{tpu_custom_call.1} parent=1 // pred_fallthru
      _
    // Predicated region
    $region14: #{tpu_custom_call.1} parent=1 // pred_check
      _
    $region15: #{tpu_custom_call.1} parent=1 // pred_check_branch
      %21 = sbr.rel (0) target = $region17
    $region16: #{tpu_custom_call.1} parent=1 // pred_region
      _
    $region17: #{tpu_custom_call.1} parent=1 // pred_fallthru
      _
    // Predicated region
    $region18: #{tpu_custom_call.1} parent=1 // pred_check
      _
    $region19: #{tpu_custom_call.1} parent=1 // pred_check_branch
      %23 = sbr.rel (0) target = $region21
    $region20: #{tpu_custom_call.1} parent=1 // pred_region
      _
    $region21: #{tpu_custom_call.1} parent=1 // pred_fallthru
      _
    // Predicated region
    $region22: #{tpu_custom_call.1} parent=1 // pred_check
      _
    $region23: #{tpu_custom_call.1} parent=1 // pred_check_branch
      %25 = sbr.rel (0) target = $region25
    $region24: #{tpu_custom_call.1} parent=1 // pred_region
      _
    $region25: #{tpu_custom_call.1} parent=1 // pred_fallthru
      _
    %v26 = vld [vmem:[%s0] sm:$0xff]
    %v27 = vld [vmem:[%s0 + $0x8] sm:$0xff]
    %v28 = vld [vmem:[%s0 + $0x10] sm:$0xff]
    %v29 = vld [vmem:[%s0 + $0x18] sm:$0xff]
    %v30 = vld [vmem:[%s0 + $0x20] sm:$0xff]
    %v31 = vld [vmem:[%s0 + $0x28] sm:$0xff]
    %v32 = vld [vmem:[%s0 + $0x30] sm:$0xff]
    %v33 = vld [vmem:[%s0 + $0x38] sm:$0xff]
    %v34 = vld [vmem:[%s0 + $0x40] sm:$0xff]
    %v35 = vld [vmem:[%s0 + $0x48] sm:$0xff]
    %v36 = vld [vmem:[%s0 + $0x50] sm:$0xff]
    %v37 = vld [vmem:[%s0 + $0x58] sm:$0xff]
    %v38 = vld [vmem:[%s0 + $0x60] sm:$0xff]
    %v39 = vld [vmem:[%s0 + $0x68] sm:$0xff]
    %v40 = vld [vmem:[%s0 + $0x70] sm:$0xff]
    %v41 = vld [vmem:[%s0 + $0x78] sm:$0xff]
    %v42 = vld [vmem:[%s1] sm:$0xff]
    %v43 = vld [vmem:[%s1 + $0x8] sm:$0xff]
    %v44 = vld [vmem:[%s1 + $0x10] sm:$0xff]
    %v45 = vld [vmem:[%s1 + $0x18] sm:$0xff]
    %v46 = vld [vmem:[%s1 + $0x20] sm:$0xff]
    %v47 = vld [vmem:[%s1 + $0x28] sm:$0xff]
    %v48 = vld [vmem:[%s1 + $0x30] sm:$0xff]
    %v49 = vld [vmem:[%s1 + $0x38] sm:$0xff]
    %v50 = vld [vmem:[%s1 + $0x40] sm:$0xff]
    %v51 = vld [vmem:[%s1 + $0x48] sm:$0xff]
    %v52 = vld [vmem:[%s1 + $0x50] sm:$0xff]
    %v53 = vld [vmem:[%s1 + $0x58] sm:$0xff]
    %v54 = vld [vmem:[%s1 + $0x60] sm:$0xff]
    %v55 = vld [vmem:[%s1 + $0x68] sm:$0xff]
    %v56 = vld [vmem:[%s1 + $0x70] sm:$0xff]
    %v57 = vld [vmem:[%s1 + $0x78] sm:$0xff]
    %v58 = vld [vmem:[%s2] sm:$0xff]
    %v59 = vld [vmem:[%s3] sm:$0xff]
    %61 = vset.pattern.permute.xlu0 0
    %62 = vperm.xlu0 %61, %v59
    %v63 = vpop.permute.xlu0 %62
    %vm65 = vcmask 523264
    %v67 = vsel %vm65, %v58, 0
    %v70 = vsel %vm65, %v26, 0
    %v73 = vsel %vm65, %v27, 0
    %v76 = vsel %vm65, %v28, 0
    %v79 = vsel %vm65, %v29, 0
    %v82 = vsel %vm65, %v30, 0
    %v85 = vsel %vm65, %v31, 0
    %v88 = vsel %vm65, %v32, 0
    %v91 = vsel %vm65, %v33, 0
    %v94 = vsel %vm65, %v34, 0
    %v97 = vsel %vm65, %v35, 0
    %v100 = vsel %vm65, %v36, 0
    %v103 = vsel %vm65, %v37, 0
    %v106 = vsel %vm65, %v38, 0
    %v109 = vsel %vm65, %v39, 0
    %v112 = vsel %vm65, %v40, 0
    %v115 = vsel %vm65, %v41, 0
    %117 = vmatpush.xpose.msra.mxu0 %v115
    %118 = vmatpush.xpose.msra.mxu0 %v112
    %119 = vmatpush.xpose.msra.mxu0 %v109
    %120 = vmatpush.xpose.msra.mxu0 %v106
    %121 = vmatpush.xpose.msra.mxu0 %v103
    %122 = vmatpush.xpose.msra.mxu0 %v100
    %123 = vmatpush.xpose.msra.mxu0 %v97
    %124 = vmatpush.xpose.msra.mxu0 %v94
    %125 = vmatpush.xpose.msra.mxu0 %v91
    %126 = vmatpush.xpose.msra.mxu0 %v88
    %127 = vmatpush.xpose.msra.mxu0 %v85
    %128 = vmatpush.xpose.msra.mxu0 %v82
    %129 = vmatpush.xpose.msra.mxu0 %v79
    %130 = vmatpush.xpose.msra.mxu0 %v76
    %131 = vmatpush.xpose.msra.mxu0 %v73
    %132 = vmatpush.xpose.msra.mxu0 %v70
    %133 = vmatmul.f32.gmra.mxu0 %v67
    %v134 = vpop.f32.mrf.mxu0
    %v135 = vadd.f32 %v63, %v134
    %136 = vdwg.mxu0
    %v137 = vld [vmem:[%s4] sm:$0xff]
    %v138 = vld [vmem:[%s5] sm:$0x1]
    %v140 = vperm.slane %v138, 0
    %v143 = vsel %vm65, %v42, 0
    %v146 = vsel %vm65, %v43, 0
    %v149 = vsel %vm65, %v44, 0
    %v152 = vsel %vm65, %v45, 0
    %v155 = vsel %vm65, %v46, 0
    %v158 = vsel %vm65, %v47, 0
    %v161 = vsel %vm65, %v48, 0
    %v164 = vsel %vm65, %v49, 0
    %v167 = vsel %vm65, %v50, 0
    %v170 = vsel %vm65, %v51, 0
    %v173 = vsel %vm65, %v52, 0
    %v176 = vsel %vm65, %v53, 0
    %v179 = vsel %vm65, %v54, 0
    %v182 = vsel %vm65, %v55, 0
    %v185 = vsel %vm65, %v56, 0
    %v188 = vsel %vm65, %v57, 0
    %v191 = vsel %vm65, %v137, 0
    %193 = vmatpush.xpose.msra.mxu0 0.0
    %194 = vmatpush.xpose.msra.mxu0 0.0
    %195 = vmatpush.xpose.msra.mxu0 0.0
    %196 = vmatpush.xpose.msra.mxu0 0.0
    %197 = vmatpush.xpose.msra.mxu0 0.0
    %198 = vmatpush.xpose.msra.mxu0 0.0
    %199 = vmatpush.xpose.msra.mxu0 0.0
    %200 = vmatpush.xpose.msra.mxu0 0.0
    %201 = vmatpush.xpose.msra.mxu0 0.0
    %202 = vmatpush.xpose.msra.mxu0 0.0
    %203 = vmatpush.xpose.msra.mxu0 0.0
    %204 = vmatpush.xpose.msra.mxu0 0.0
    %205 = vmatpush.xpose.msra.mxu0 0.0
    %206 = vmatpush.xpose.msra.mxu0 0.0
    %207 = vmatpush.xpose.msra.mxu0 0.0
    %208 = vmatpush.xpose.msra.mxu0 %v191
    %209 = vmatmul.f32.gmra.mxu0 %v143
    %v210 = vpop.f32.mrf.mxu0
    %v211 = vadd.f32 %v140, %v210
    %212 = vmatmul.f32.gmra.mxu0 %v146
    %v213 = vpop.f32.mrf.mxu0
    %v214 = vadd.f32 %v140, %v213
    %215 = vmatmul.f32.gmra.mxu0 %v149
    %v216 = vpop.f32.mrf.mxu0
    %v217 = vadd.f32 %v140, %v216
    %218 = vmatmul.f32.gmra.mxu0 %v152
    %v219 = vpop.f32.mrf.mxu0
    %v220 = vadd.f32 %v140, %v219
    %221 = vmatmul.f32.gmra.mxu0 %v155
    %v222 = vpop.f32.mrf.mxu0
    %v223 = vadd.f32 %v140, %v222
    %224 = vmatmul.f32.gmra.mxu0 %v158
    %v225 = vpop.f32.mrf.mxu0
    %v226 = vadd.f32 %v140, %v225
    %227 = vmatmul.f32.gmra.mxu0 %v161
    %v228 = vpop.f32.mrf.mxu0
    %v229 = vadd.f32 %v140, %v228
    %230 = vmatmul.f32.gmra.mxu0 %v164
    %v231 = vpop.f32.mrf.mxu0
    %v232 = vadd.f32 %v140, %v231
    %233 = vmatmul.f32.gmra.mxu0 %v167
    %v234 = vpop.f32.mrf.mxu0
    %v235 = vadd.f32 %v140, %v234
    %236 = vmatmul.f32.gmra.mxu0 %v170
    %v237 = vpop.f32.mrf.mxu0
    %v238 = vadd.f32 %v140, %v237
    %239 = vmatmul.f32.gmra.mxu0 %v173
    %v240 = vpop.f32.mrf.mxu0
    %v241 = vadd.f32 %v140, %v240
    %242 = vmatmul.f32.gmra.mxu0 %v176
    %v243 = vpop.f32.mrf.mxu0
    %v244 = vadd.f32 %v140, %v243
    %245 = vmatmul.f32.gmra.mxu0 %v179
    %v246 = vpop.f32.mrf.mxu0
    %v247 = vadd.f32 %v140, %v246
    %248 = vmatmul.f32.gmra.mxu0 %v182
    %v249 = vpop.f32.mrf.mxu0
    %v250 = vadd.f32 %v140, %v249
    %251 = vmatmul.f32.gmra.mxu0 %v185
    %v252 = vpop.f32.mrf.mxu0
    %v253 = vadd.f32 %v140, %v252
    %254 = vmatmul.f32.gmra.mxu0 %v188
    %v255 = vpop.f32.mrf.mxu0
    %v256 = vadd.f32 %v140, %v255
    %257 = vdwg.mxu0
    %258 = vst [vmem:[#allocation2] sm:$0xff] %v135
    %vm259 = vcmask 64512
    %260 = vst.msk [vmem:[%s7] sm:$0xff] %vm259, %v211
    %261 = vst.msk [vmem:[%s7 + $0x8] sm:$0xff] %vm259, %v214
    %262 = vst.msk [vmem:[%s7 + $0x10] sm:$0xff] %vm259, %v217
    %263 = vst.msk [vmem:[%s7 + $0x18] sm:$0xff] %vm259, %v220
    %264 = vst.msk [vmem:[%s7 + $0x20] sm:$0xff] %vm259, %v223
    %265 = vst.msk [vmem:[%s7 + $0x28] sm:$0xff] %vm259, %v226
    %266 = vst.msk [vmem:[%s7 + $0x30] sm:$0xff] %vm259, %v229
    %267 = vst.msk [vmem:[%s7 + $0x38] sm:$0xff] %vm259, %v232
    %268 = vst.msk [vmem:[%s7 + $0x40] sm:$0xff] %vm259, %v235
    %269 = vst.msk [vmem:[%s7 + $0x48] sm:$0xff] %vm259, %v238
    %270 = vst.msk [vmem:[%s7 + $0x50] sm:$0xff] %vm259, %v241
    %271 = vst.msk [vmem:[%s7 + $0x58] sm:$0xff] %vm259, %v244
    %272 = vst.msk [vmem:[%s7 + $0x60] sm:$0xff] %vm259, %v247
    %273 = vst.msk [vmem:[%s7 + $0x68] sm:$0xff] %vm259, %v250
    %274 = vst.msk [vmem:[%s7 + $0x70] sm:$0xff] %vm259, %v253
    %275 = vst.msk [vmem:[%s7 + $0x78] sm:$0xff] %vm259, %v256
    %s276 = scalar_lea.vmem %s2, 8
    %v277 = vld [vmem:[%s276] sm:$0xff]
    %s278 = scalar_lea.vmem %s3, 8
    %v279 = vld [vmem:[%s278] sm:$0xff]
    %281 = vset.pattern.permute.xlu0 0
    %282 = vperm.xlu0 %281, %v279
    %v283 = vpop.permute.xlu0 %282
    %v286 = vsel %vm65, %v277, 0
    %288 = vmatpush.xpose.msra.mxu0 %v115
    %289 = vmatpush.xpose.msra.mxu0 %v112
    %290 = vmatpush.xpose.msra.mxu0 %v109
    %291 = vmatpush.xpose.msra.mxu0 %v106
    %292 = vmatpush.xpose.msra.mxu0 %v103
    %293 = vmatpush.xpose.msra.mxu0 %v100
    %294 = vmatpush.xpose.msra.mxu0 %v97
    %295 = vmatpush.xpose.msra.mxu0 %v94
    %296 = vmatpush.xpose.msra.mxu0 %v91
    %297 = vmatpush.xpose.msra.mxu0 %v88
    %298 = vmatpush.xpose.msra.mxu0 %v85
    %299 = vmatpush.xpose.msra.mxu0 %v82
    %300 = vmatpush.xpose.msra.mxu0 %v79
    %301 = vmatpush.xpose.msra.mxu0 %v76
    %302 = vmatpush.xpose.msra.mxu0 %v73
    %303 = vmatpush.xpose.msra.mxu0 %v70
    %304 = vmatmul.f32.gmra.mxu0 %v286
    %v305 = vpop.f32.mrf.mxu0
    %v306 = vadd.f32 %v283, %v305
    %307 = vdwg.mxu0
    %s308 = scalar_lea.vmem %s4, 8
    %v309 = vld [vmem:[%s308] sm:$0xff]
    %s310 = scalar_lea.vmem %s5, 1
    %v311 = vld [vmem:[%s310] sm:$0x1]
    %v313 = vperm.slane %v311, 0
    %v316 = vsel %vm65, %v309, 0
    %318 = vmatpush.xpose.msra.mxu0 0.0
    %319 = vmatpush.xpose.msra.mxu0 0.0
    %320 = vmatpush.xpose.msra.mxu0 0.0
    %321 = vmatpush.xpose.msra.mxu0 0.0
    %322 = vmatpush.xpose.msra.mxu0 0.0
    %323 = vmatpush.xpose.msra.mxu0 0.0
    %324 = vmatpush.xpose.msra.mxu0 0.0
    %325 = vmatpush.xpose.msra.mxu0 0.0
    %326 = vmatpush.xpose.msra.mxu0 0.0
    %327 = vmatpush.xpose.msra.mxu0 0.0
    %328 = vmatpush.xpose.msra.mxu0 0.0
    %329 = vmatpush.xpose.msra.mxu0 0.0
    %330 = vmatpush.xpose.msra.mxu0 0.0
    %331 = vmatpush.xpose.msra.mxu0 0.0
    %332 = vmatpush.xpose.msra.mxu0 0.0
    %333 = vmatpush.xpose.msra.mxu0 %v316
    %334 = vmatmul.f32.gmra.mxu0 %v143
    %v335 = vpop.f32.mrf.mxu0
    %v336 = vadd.f32 %v313, %v335
    %337 = vmatmul.f32.gmra.mxu0 %v146
    %v338 = vpop.f32.mrf.mxu0
    %v339 = vadd.f32 %v313, %v338
    %340 = vmatmul.f32.gmra.mxu0 %v149
    %v341 = vpop.f32.mrf.mxu0
    %v342 = vadd.f32 %v313, %v341
    %343 = vmatmul.f32.gmra.mxu0 %v152
    %v344 = vpop.f32.mrf.mxu0
    %v345 = vadd.f32 %v313, %v344
    %346 = vmatmul.f32.gmra.mxu0 %v155
    %v347 = vpop.f32.mrf.mxu0
    %v348 = vadd.f32 %v313, %v347
    %349 = vmatmul.f32.gmra.mxu0 %v158
    %v350 = vpop.f32.mrf.mxu0
    %v351 = vadd.f32 %v313, %v350
    %352 = vmatmul.f32.gmra.mxu0 %v161
    %v353 = vpop.f32.mrf.mxu0
    %v354 = vadd.f32 %v313, %v353
    %355 = vmatmul.f32.gmra.mxu0 %v164
    %v356 = vpop.f32.mrf.mxu0
    %v357 = vadd.f32 %v313, %v356
    %358 = vmatmul.f32.gmra.mxu0 %v167
    %v359 = vpop.f32.mrf.mxu0
    %v360 = vadd.f32 %v313, %v359
    %361 = vmatmul.f32.gmra.mxu0 %v170
    %v362 = vpop.f32.mrf.mxu0
    %v363 = vadd.f32 %v313, %v362
    %364 = vmatmul.f32.gmra.mxu0 %v173
    %v365 = vpop.f32.mrf.mxu0
    %v366 = vadd.f32 %v313, %v365
    %367 = vmatmul.f32.gmra.mxu0 %v176
    %v368 = vpop.f32.mrf.mxu0
    %v369 = vadd.f32 %v313, %v368
    %370 = vmatmul.f32.gmra.mxu0 %v179
    %v371 = vpop.f32.mrf.mxu0
    %v372 = vadd.f32 %v313, %v371
    %373 = vmatmul.f32.gmra.mxu0 %v182
    %v374 = vpop.f32.mrf.mxu0
    %v375 = vadd.f32 %v313, %v374
    %376 = vmatmul.f32.gmra.mxu0 %v185
    %v377 = vpop.f32.mrf.mxu0
    %v378 = vadd.f32 %v313, %v377
    %379 = vmatmul.f32.gmra.mxu0 %v188
    %v380 = vpop.f32.mrf.mxu0
    %v381 = vadd.f32 %v313, %v380
    %382 = vdwg.mxu0
    %s383 = scalar_lea.vmem [#allocation2], 8
    %384 = vst [vmem:[%s383] sm:$0xff] %v306
    %s385 = scalar_lea.vmem %s7, 128
    %386 = vst.msk [vmem:[%s385] sm:$0xff] %vm259, %v336
    %387 = vst.msk [vmem:[%s385 + $0x8] sm:$0xff] %vm259, %v339
    %388 = vst.msk [vmem:[%s385 + $0x10] sm:$0xff] %vm259, %v342
    %389 = vst.msk [vmem:[%s385 + $0x18] sm:$0xff] %vm259, %v345
    %390 = vst.msk [vmem:[%s385 + $0x20] sm:$0xff] %vm259, %v348
    %391 = vst.msk [vmem:[%s385 + $0x28] sm:$0xff] %vm259, %v351
    %392 = vst.msk [vmem:[%s385 + $0x30] sm:$0xff] %vm259, %v354
    %393 = vst.msk [vmem:[%s385 + $0x38] sm:$0xff] %vm259, %v357
    %394 = vst.msk [vmem:[%s385 + $0x40] sm:$0xff] %vm259, %v360
    %395 = vst.msk [vmem:[%s385 + $0x48] sm:$0xff] %vm259, %v363
    %396 = vst.msk [vmem:[%s385 + $0x50] sm:$0xff] %vm259, %v366
    %397 = vst.msk [vmem:[%s385 + $0x58] sm:$0xff] %vm259, %v369
    %398 = vst.msk [vmem:[%s385 + $0x60] sm:$0xff] %vm259, %v372
    %399 = vst.msk [vmem:[%s385 + $0x68] sm:$0xff] %vm259, %v375
    %400 = vst.msk [vmem:[%s385 + $0x70] sm:$0xff] %vm259, %v378
    %401 = vst.msk [vmem:[%s385 + $0x78] sm:$0xff] %vm259, %v381
    %s402 = scalar_lea.vmem %s2, 16
    %v403 = vld [vmem:[%s402] sm:$0xff]
    %s404 = scalar_lea.vmem %s3, 16
    %v405 = vld [vmem:[%s404] sm:$0xff]
    %407 = vset.pattern.permute.xlu0 0
    %408 = vperm.xlu0 %407, %v405
    %v409 = vpop.permute.xlu0 %408
    %v412 = vsel %vm65, %v403, 0
    %414 = vmatpush.xpose.msra.mxu0 %v115
    %415 = vmatpush.xpose.msra.mxu0 %v112
    %416 = vmatpush.xpose.msra.mxu0 %v109
    %417 = vmatpush.xpose.msra.mxu0 %v106
    %418 = vmatpush.xpose.msra.mxu0 %v103
    %419 = vmatpush.xpose.msra.mxu0 %v100
    %420 = vmatpush.xpose.msra.mxu0 %v97
    %421 = vmatpush.xpose.msra.mxu0 %v94
    %422 = vmatpush.xpose.msra.mxu0 %v91
    %423 = vmatpush.xpose.msra.mxu0 %v88
    %424 = vmatpush.xpose.msra.mxu0 %v85
    %425 = vmatpush.xpose.msra.mxu0 %v82
    %426 = vmatpush.xpose.msra.mxu0 %v79
    %427 = vmatpush.xpose.msra.mxu0 %v76
    %428 = vmatpush.xpose.msra.mxu0 %v73
    %429 = vmatpush.xpose.msra.mxu0 %v70
    %430 = vmatmul.f32.gmra.mxu0 %v412
    %v431 = vpop.f32.mrf.mxu0
    %v432 = vadd.f32 %v409, %v431
    %433 = vdwg.mxu0
    %s434 = scalar_lea.vmem %s4, 16
    %v435 = vld [vmem:[%s434] sm:$0xff]
    %s436 = scalar_lea.vmem %s5, 2
    %v437 = vld [vmem:[%s436] sm:$0x1]
    %v439 = vperm.slane %v437, 0
    %v442 = vsel %vm65, %v435, 0
    %444 = vmatpush.xpose.msra.mxu0 0.0
    %445 = vmatpush.xpose.msra.mxu0 0.0
    %446 = vmatpush.xpose.msra.mxu0 0.0
    %447 = vmatpush.xpose.msra.mxu0 0.0
    %448 = vmatpush.xpose.msra.mxu0 0.0
    %449 = vmatpush.xpose.msra.mxu0 0.0
    %450 = vmatpush.xpose.msra.mxu0 0.0
    %451 = vmatpush.xpose.msra.mxu0 0.0
    %452 = vmatpush.xpose.msra.mxu0 0.0
    %453 = vmatpush.xpose.msra.mxu0 0.0
    %454 = vmatpush.xpose.msra.mxu0 0.0
    %455 = vmatpush.xpose.msra.mxu0 0.0
    %456 = vmatpush.xpose.msra.mxu0 0.0
    %457 = vmatpush.xpose.msra.mxu0 0.0
    %458 = vmatpush.xpose.msra.mxu0 0.0
    %459 = vmatpush.xpose.msra.mxu0 %v442
    %460 = vmatmul.f32.gmra.mxu0 %v143
    %v461 = vpop.f32.mrf.mxu0
    %v462 = vadd.f32 %v439, %v461
    %463 = vmatmul.f32.gmra.mxu0 %v146
    %v464 = vpop.f32.mrf.mxu0
    %v465 = vadd.f32 %v439, %v464
    %466 = vmatmul.f32.gmra.mxu0 %v149
    %v467 = vpop.f32.mrf.mxu0
    %v468 = vadd.f32 %v439, %v467
    %469 = vmatmul.f32.gmra.mxu0 %v152
    %v470 = vpop.f32.mrf.mxu0
    %v471 = vadd.f32 %v439, %v470
    %472 = vmatmul.f32.gmra.mxu0 %v155
    %v473 = vpop.f32.mrf.mxu0
    %v474 = vadd.f32 %v439, %v473
    %475 = vmatmul.f32.gmra.mxu0 %v158
    %v476 = vpop.f32.mrf.mxu0
    %v477 = vadd.f32 %v439, %v476
    %478 = vmatmul.f32.gmra.mxu0 %v161
    %v479 = vpop.f32.mrf.mxu0
    %v480 = vadd.f32 %v439, %v479
    %481 = vmatmul.f32.gmra.mxu0 %v164
    %v482 = vpop.f32.mrf.mxu0
    %v483 = vadd.f32 %v439, %v482
    %484 = vmatmul.f32.gmra.mxu0 %v167
    %v485 = vpop.f32.mrf.mxu0
    %v486 = vadd.f32 %v439, %v485
    %487 = vmatmul.f32.gmra.mxu0 %v170
    %v488 = vpop.f32.mrf.mxu0
    %v489 = vadd.f32 %v439, %v488
    %490 = vmatmul.f32.gmra.mxu0 %v173
    %v491 = vpop.f32.mrf.mxu0
    %v492 = vadd.f32 %v439, %v491
    %493 = vmatmul.f32.gmra.mxu0 %v176
    %v494 = vpop.f32.mrf.mxu0
    %v495 = vadd.f32 %v439, %v494
    %496 = vmatmul.f32.gmra.mxu0 %v179
    %v497 = vpop.f32.mrf.mxu0
    %v498 = vadd.f32 %v439, %v497
    %499 = vmatmul.f32.gmra.mxu0 %v182
    %v500 = vpop.f32.mrf.mxu0
    %v501 = vadd.f32 %v439, %v500
    %502 = vmatmul.f32.gmra.mxu0 %v185
    %v503 = vpop.f32.mrf.mxu0
    %v504 = vadd.f32 %v439, %v503
    %505 = vmatmul.f32.gmra.mxu0 %v188
    %v506 = vpop.f32.mrf.mxu0
    %v507 = vadd.f32 %v439, %v506
    %508 = vdwg.mxu0
    %s509 = scalar_lea.vmem [#allocation2], 16
    %510 = vst [vmem:[%s509] sm:$0xff] %v432
    %s511 = scalar_lea.vmem %s7, 256
    %512 = vst.msk [vmem:[%s511] sm:$0xff] %vm259, %v462
    %513 = vst.msk [vmem:[%s511 + $0x8] sm:$0xff] %vm259, %v465
    %514 = vst.msk [vmem:[%s511 + $0x10] sm:$0xff] %vm259, %v468
    %515 = vst.msk [vmem:[%s511 + $0x18] sm:$0xff] %vm259, %v471
    %516 = vst.msk [vmem:[%s511 + $0x20] sm:$0xff] %vm259, %v474
    %517 = vst.msk [vmem:[%s511 + $0x28] sm:$0xff] %vm259, %v477
    %518 = vst.msk [vmem:[%s511 + $0x30] sm:$0xff] %vm259, %v480
    %519 = vst.msk [vmem:[%s511 + $0x38] sm:$0xff] %vm259, %v483
    %520 = vst.msk [vmem:[%s511 + $0x40] sm:$0xff] %vm259, %v486
    %521 = vst.msk [vmem:[%s511 + $0x48] sm:$0xff] %vm259, %v489
    %522 = vst.msk [vmem:[%s511 + $0x50] sm:$0xff] %vm259, %v492
    %523 = vst.msk [vmem:[%s511 + $0x58] sm:$0xff] %vm259, %v495
    %524 = vst.msk [vmem:[%s511 + $0x60] sm:$0xff] %vm259, %v498
    %525 = vst.msk [vmem:[%s511 + $0x68] sm:$0xff] %vm259, %v501
    %526 = vst.msk [vmem:[%s511 + $0x70] sm:$0xff] %vm259, %v504
    %527 = vst.msk [vmem:[%s511 + $0x78] sm:$0xff] %vm259, %v507
    %s528 = scalar_lea.vmem %s2, 24
    %v529 = vld [vmem:[%s528] sm:$0xff]
    %s530 = scalar_lea.vmem %s3, 24
    %v531 = vld [vmem:[%s530] sm:$0xff]
    %533 = vset.pattern.permute.xlu0 0
    %534 = vperm.xlu0 %533, %v531
    %v535 = vpop.permute.xlu0 %534
    %v538 = vsel %vm65, %v529, 0
    %540 = vmatpush.xpose.msra.mxu0 %v115
    %541 = vmatpush.xpose.msra.mxu0 %v112
    %542 = vmatpush.xpose.msra.mxu0 %v109
    %543 = vmatpush.xpose.msra.mxu0 %v106
    %544 = vmatpush.xpose.msra.mxu0 %v103
    %545 = vmatpush.xpose.msra.mxu0 %v100
    %546 = vmatpush.xpose.msra.mxu0 %v97
    %547 = vmatpush.xpose.msra.mxu0 %v94
    %548 = vmatpush.xpose.msra.mxu0 %v91
    %549 = vmatpush.xpose.msra.mxu0 %v88
    %550 = vmatpush.xpose.msra.mxu0 %v85
    %551 = vmatpush.xpose.msra.mxu0 %v82
    %552 = vmatpush.xpose.msra.mxu0 %v79
    %553 = vmatpush.xpose.msra.mxu0 %v76
    %554 = vmatpush.xpose.msra.mxu0 %v73
    %555 = vmatpush.xpose.msra.mxu0 %v70
    %556 = vmatmul.f32.gmra.mxu0 %v538
    %v557 = vpop.f32.mrf.mxu0
    %v558 = vadd.f32 %v535, %v557
    %559 = vdwg.mxu0
    %s560 = scalar_lea.vmem %s4, 24
    %v561 = vld [vmem:[%s560] sm:$0xff]
    %s562 = scalar_lea.vmem %s5, 3
    %v563 = vld [vmem:[%s562] sm:$0x1]
    %v565 = vperm.slane %v563, 0
    %v568 = vsel %vm65, %v561, 0
    %570 = vmatpush.xpose.msra.mxu0 0.0
    %571 = vmatpush.xpose.msra.mxu0 0.0
    %572 = vmatpush.xpose.msra.mxu0 0.0
    %573 = vmatpush.xpose.msra.mxu0 0.0
    %574 = vmatpush.xpose.msra.mxu0 0.0
    %575 = vmatpush.xpose.msra.mxu0 0.0
    %576 = vmatpush.xpose.msra.mxu0 0.0
    %577 = vmatpush.xpose.msra.mxu0 0.0
    %578 = vmatpush.xpose.msra.mxu0 0.0
    %579 = vmatpush.xpose.msra.mxu0 0.0
    %580 = vmatpush.xpose.msra.mxu0 0.0
    %581 = vmatpush.xpose.msra.mxu0 0.0
    %582 = vmatpush.xpose.msra.mxu0 0.0
    %583 = vmatpush.xpose.msra.mxu0 0.0
    %584 = vmatpush.xpose.msra.mxu0 0.0
    %585 = vmatpush.xpose.msra.mxu0 %v568
    %586 = vmatmul.f32.gmra.mxu0 %v143
    %v587 = vpop.f32.mrf.mxu0
    %v588 = vadd.f32 %v565, %v587
    %589 = vmatmul.f32.gmra.mxu0 %v146
    %v590 = vpop.f32.mrf.mxu0
    %v591 = vadd.f32 %v565, %v590
    %592 = vmatmul.f32.gmra.mxu0 %v149
    %v593 = vpop.f32.mrf.mxu0
    %v594 = vadd.f32 %v565, %v593
    %595 = vmatmul.f32.gmra.mxu0 %v152
    %v596 = vpop.f32.mrf.mxu0
    %v597 = vadd.f32 %v565, %v596
    %598 = vmatmul.f32.gmra.mxu0 %v155
    %v599 = vpop.f32.mrf.mxu0
    %v600 = vadd.f32 %v565, %v599
    %601 = vmatmul.f32.gmra.mxu0 %v158
    %v602 = vpop.f32.mrf.mxu0
    %v603 = vadd.f32 %v565, %v602
    %604 = vmatmul.f32.gmra.mxu0 %v161
    %v605 = vpop.f32.mrf.mxu0
    %v606 = vadd.f32 %v565, %v605
    %607 = vmatmul.f32.gmra.mxu0 %v164
    %v608 = vpop.f32.mrf.mxu0
    %v609 = vadd.f32 %v565, %v608
    %610 = vmatmul.f32.gmra.mxu0 %v167
    %v611 = vpop.f32.mrf.mxu0
    %v612 = vadd.f32 %v565, %v611
    %613 = vmatmul.f32.gmra.mxu0 %v170
    %v614 = vpop.f32.mrf.mxu0
    %v615 = vadd.f32 %v565, %v614
    %616 = vmatmul.f32.gmra.mxu0 %v173
    %v617 = vpop.f32.mrf.mxu0
    %v618 = vadd.f32 %v565, %v617
    %619 = vmatmul.f32.gmra.mxu0 %v176
    %v620 = vpop.f32.mrf.mxu0
    %v621 = vadd.f32 %v565, %v620
    %622 = vmatmul.f32.gmra.mxu0 %v179
    %v623 = vpop.f32.mrf.mxu0
    %v624 = vadd.f32 %v565, %v623
    %625 = vmatmul.f32.gmra.mxu0 %v182
    %v626 = vpop.f32.mrf.mxu0
    %v627 = vadd.f32 %v565, %v626
    %628 = vmatmul.f32.gmra.mxu0 %v185
    %v629 = vpop.f32.mrf.mxu0
    %v630 = vadd.f32 %v565, %v629
    %631 = vmatmul.f32.gmra.mxu0 %v188
    %v632 = vpop.f32.mrf.mxu0
    %v633 = vadd.f32 %v565, %v632
    %634 = vdwg.mxu0
    %s635 = scalar_lea.vmem [#allocation2], 24
    %636 = vst [vmem:[%s635] sm:$0xff] %v558
    %s637 = scalar_lea.vmem %s7, 384
    %638 = vst.msk [vmem:[%s637] sm:$0xff] %vm259, %v588
    %639 = vst.msk [vmem:[%s637 + $0x8] sm:$0xff] %vm259, %v591
    %640 = vst.msk [vmem:[%s637 + $0x10] sm:$0xff] %vm259, %v594
    %641 = vst.msk [vmem:[%s637 + $0x18] sm:$0xff] %vm259, %v597
    %642 = vst.msk [vmem:[%s637 + $0x20] sm:$0xff] %vm259, %v600
    %643 = vst.msk [vmem:[%s637 + $0x28] sm:$0xff] %vm259, %v603
    %644 = vst.msk [vmem:[%s637 + $0x30] sm:$0xff] %vm259, %v606
    %645 = vst.msk [vmem:[%s637 + $0x38] sm:$0xff] %vm259, %v609
    %646 = vst.msk [vmem:[%s637 + $0x40] sm:$0xff] %vm259, %v612
    %647 = vst.msk [vmem:[%s637 + $0x48] sm:$0xff] %vm259, %v615
    %648 = vst.msk [vmem:[%s637 + $0x50] sm:$0xff] %vm259, %v618
    %649 = vst.msk [vmem:[%s637 + $0x58] sm:$0xff] %vm259, %v621
    %650 = vst.msk [vmem:[%s637 + $0x60] sm:$0xff] %vm259, %v624
    %651 = vst.msk [vmem:[%s637 + $0x68] sm:$0xff] %vm259, %v627
    %652 = vst.msk [vmem:[%s637 + $0x70] sm:$0xff] %vm259, %v630
    %653 = vst.msk [vmem:[%s637 + $0x78] sm:$0xff] %vm259, %v633
    // Predicated region
    $region26: #{tpu_custom_call.1} parent=1 // pred_check
      _
    $region27: #{tpu_custom_call.1} parent=1 // pred_check_branch
      %655 = sbr.rel (0) target = $region29
    $region28: #{tpu_custom_call.1} parent=1 // pred_region
      %657 = vsyncadd [#allocation3], 0
      %s658 = sshll.u32 [#allocation2], 4
      %s659 = int_to_ptr.vmem [resolvable:$true] %s658
      %s660 = sshll.u32 %s6, 4
      %s661 = int_to_ptr.hbm [resolvable:$true] %s660
      %666 = dma.vmem_to_hbm [thread:$0]  %s659, 512, %s661, [#allocation3], 128, 128, 8
    $region29: #{tpu_custom_call.1} parent=1 // pred_fallthru
      _
    // Predicated region
    $region30: #{tpu_custom_call.1} parent=1 // pred_check
      _
    $region31: #{tpu_custom_call.1} parent=1 // pred_check_branch
      %668 = sbr.rel (0) target = $region33
    $region32: #{tpu_custom_call.1} parent=1 // pred_region
      _
    $region33: #{tpu_custom_call.1} parent=1 // pred_fallthru
      _
    // Predicated region
    $region34: #{tpu_custom_call.1} parent=1 // pred_check
      _
    $region35: #{tpu_custom_call.1} parent=1 // pred_check_branch
      %670 = sbr.rel (0) target = $region37
    $region36: #{tpu_custom_call.1} parent=1 // pred_region
      %672 = dma.done [#allocation3], 512
    $region37: #{tpu_custom_call.1} parent=1 // pred_fallthru
      _
    // Predicated region
    $region38: #{tpu_custom_call.1} parent=1 // pred_check
      _
    $region39: #{tpu_custom_call.1} parent=1 // pred_check_branch
      %674 = sbr.rel (0) target = $region41
    $region40: #{tpu_custom_call.1} parent=1 // pred_region
      _
    $region41: #{tpu_custom_call.1} parent=1 // pred_fallthru
      _
    %675 = vsyncpa [#allocation3], 1

</llo_original>
